<compile_context>
chip_gen: v7x
topology: tpu7x:2x2x1
jax: 0.10.0
libtpu: 0.0.40
codegen_flags: <defaults>
</compile_context>

<pallas_src>
import jax
import jax.numpy as jnp
import numpy as np
from jax.experimental import pallas as pl
from jax.experimental.pallas import tpu as pltpu

HIDDEN = 32          # A3TGCN out_channels (fixed to 32 in the module)
OUT_LANES = 128      # lane-dense output / head slab width


def _feat_pad(f):
    return max(8, ((f + 7) // 8) * 8)


# ----------------------------------------------------------------------------
# Pallas kernel: all periods batched, 4 lane-dense MXU matmuls, single step
# ----------------------------------------------------------------------------
def _a3tgcn_kernel(xs_ref, ahat_ref, wbig_ref, bbig_ref, sprob_ref,
                   wlin_ref, blin_ref, out_ref):
    # All periods at once: [N, T*Fp] @ [T*Fp, 2*T*H] -> [N, 2*T*H]
    gx = jnp.dot(xs_ref[...], wbig_ref[...], preferred_element_type=jnp.float32)
    # Graph propagation + fused (conv + gate) bias: [N, N] @ [N, 2*T*H]
    gc = (jnp.dot(ahat_ref[...], gx, preferred_element_type=jnp.float32)
          + bbig_ref[...])
    th = sprob_ref.shape[0]                     # T * HIDDEN (256 here, 128-aligned)
    z = jax.nn.sigmoid(gc[:, :th])              # update gates, all periods
    ht = jnp.tanh(gc[:, th:])                   # candidate states, all periods
    term = (1.0 - z) * ht                       # GRU step from H = 0
    # Attention-weighted sum over periods as an MXU matmul -> [N, 128] slab
    acc = jnp.dot(term, sprob_ref[...], preferred_element_type=jnp.float32)
    h = jnp.maximum(acc, 0.0)                   # ReLU
    out_ref[...] = (jnp.dot(h, wlin_ref[...], preferred_element_type=jnp.float32)
                    + blin_ref[...])


# ----------------------------------------------------------------------------
# Glue: dense GCN operator, parameter init / packing, pallas_call wrapper
# ----------------------------------------------------------------------------
def gcn_norm_dense(edge_index, edge_weight, num_nodes):
    """Dense GCNConv propagation operator (sym norm, add self-loops, fill=1).

    PyG semantics: norm value for edge (row, col) = deg^-1/2[row]*w*deg^-1/2[col]
    with deg = in-degree (sum at col, incl. self loops); aggregation happens at
    the target node (col), so the dense operator applied to X is Ahat^T @ X.
    """
    A = jnp.zeros((num_nodes, num_nodes), jnp.float32)
    A = A.at[edge_index[0], edge_index[1]].add(edge_weight.astype(jnp.float32))
    diag = jnp.diag(A)                                  # add_remaining_self_loops
    A = A + jnp.diag(jnp.where(diag == 0.0, 1.0, 0.0))
    deg = A.sum(axis=0)                                 # in-degree
    dis = jnp.where(deg > 0, jax.lax.rsqrt(jnp.where(deg > 0, deg, 1.0)), 0.0)
    a_norm = dis[:, None] * A * dis[None, :]
    return a_norm.T


def init_params(key, node_features, periods, horizon):
    ks = jax.random.split(key, 12)

    def glorot(k, shape):
        fan_in, fan_out = shape[-2], shape[-1]
        lim = (6.0 / (fan_in + fan_out)) ** 0.5
        return jax.random.uniform(k, shape, jnp.float32, -lim, lim)

    def unif(k, shape, fan_in):
        lim = 1.0 / np.sqrt(fan_in)
        return jax.random.uniform(k, shape, jnp.float32, -lim, lim)

    p = {}
    # TGCN cell: GCNConv(F->32) + Linear(64->32) for each of z / r / h
    p["wz"] = glorot(ks[0], (node_features, HIDDEN)); p["bz"] = unif(ks[1], (HIDDEN,), HIDDEN)
    p["wr"] = glorot(ks[2], (node_features, HIDDEN)); p["br"] = jnp.zeros((HIDDEN,), jnp.float32)
    p["wh"] = glorot(ks[3], (node_features, HIDDEN)); p["bh"] = unif(ks[4], (HIDDEN,), HIDDEN)
    p["wlz"] = glorot(ks[5], (HIDDEN, 2 * HIDDEN)); p["blz"] = unif(ks[6], (HIDDEN,), 2 * HIDDEN)
    p["wlr"] = glorot(ks[7], (HIDDEN, 2 * HIDDEN)); p["blr"] = jnp.zeros((HIDDEN,), jnp.float32)
    p["wlh"] = glorot(ks[8], (HIDDEN, 2 * HIDDEN)); p["blh"] = unif(ks[9], (HIDDEN,), 2 * HIDDEN)
    # A3TGCN attention over periods (torch.nn.init.uniform_ default U[0,1))
    p["attention"] = jax.random.uniform(ks[10], (periods,), jnp.float32, 0.0, 1.0)
    # head Linear(32 -> horizon), torch layout [out, in]
    kw, kb = jax.random.split(ks[11])
    p["wlin"] = unif(kw, (horizon, HIDDEN), HIDDEN)
    p["blin"] = unif(kb, (horizon,), HIDDEN)
    return p


def pack_params(p, node_features, periods):
    fp = _feat_pad(node_features)
    T = periods
    horizon = p["wlin"].shape[0]

    # --- algebraic fusion of the gate Linear into the GCNConv weight (H == 0) ---
    wlz_c = p["wlz"][:, :HIDDEN].T                       # conv half of gate Linear
    wlh_c = p["wlh"][:, :HIDDEN].T
    wz_f = p["wz"] @ wlz_c                               # [F, 32]
    wh_f = p["wh"] @ wlh_c
    bz_f = p["bz"] @ wlz_c + p["blz"]                    # [32]
    bh_f = p["bh"] @ wlh_c + p["blh"]
    wz_f = jnp.pad(wz_f, ((0, fp - node_features), (0, 0)))   # [Fp, 32]
    wh_f = jnp.pad(wh_f, ((0, fp - node_features), (0, 0)))

    # --- lane-stack all periods: block-diagonal weights, z columns then h columns ---
    eye_t = jnp.eye(T, dtype=jnp.float32)
    wbig = jnp.concatenate([jnp.kron(eye_t, wz_f), jnp.kron(eye_t, wh_f)],
                           axis=1)                                      # [T*Fp, 2*T*32]
    bbig = jnp.concatenate([jnp.tile(bz_f, T), jnp.tile(bh_f, T)])[None, :]  # [1, 2*T*32]

    # --- attention probs folded into a period-sum selection matrix (MXU reduce) ---
    probs = jax.nn.softmax(p["attention"].astype(jnp.float32))          # [T]
    sel = jnp.tile(jnp.eye(HIDDEN, OUT_LANES, dtype=jnp.float32), (T, 1))  # [T*32, 128]
    sprob = sel * jnp.repeat(probs, HIDDEN)[:, None]

    # --- lane-dense head: [128, 128] / [1, 128] (horizon cols real, rest zero) ---
    wlin = jnp.zeros((OUT_LANES, OUT_LANES), jnp.float32).at[:HIDDEN, :horizon].set(
        p["wlin"].T)
    blin = jnp.zeros((1, OUT_LANES), jnp.float32).at[:, :horizon].set(p["blin"][None, :])
    return wbig, bbig, sprob, wlin, blin


@jax.jit
def a3tgcn_temporal(x, edge_index, edge_weight, params):
    """Matches A3TGCN_Temporal.forward. x: [num_nodes, node_features, periods]."""
    N, F, T = x.shape
    fp = _feat_pad(F)
    horizon = params["wlin"].shape[0]

    ahat = gcn_norm_dense(edge_index, edge_weight, N)
    # lane-stack the T periods: [N, F, T] -> [N, T, Fp] -> [N, T*Fp]
    xs = jnp.pad(jnp.transpose(x.astype(jnp.float32), (0, 2, 1)),
                 ((0, 0), (0, 0), (0, fp - F))).reshape(N, T * fp)
    wbig, bbig, sprob, wlin, blin = pack_params(params, F, T)
    # NOTE: for v6e/v7x MXU rate, cast xs/ahat/wbig to bf16 here (keep
    # preferred_element_type=f32 in the kernel); left in f32 for 5e-3 parity.

    gh = 2 * T * HIDDEN
    flops = (2 * N * (T * fp) * gh          # X @ Wbig
             + 2 * N * N * gh               # Ahat @ GX
             + 2 * N * (T * HIDDEN) * OUT_LANES   # period reduce
             + 2 * N * OUT_LANES * OUT_LANES)     # head
    bytes_acc = 4 * (xs.size + ahat.size + wbig.size + bbig.size + sprob.size
                     + wlin.size + blin.size + N * OUT_LANES)

    out = pl.pallas_call(
        _a3tgcn_kernel,
        in_specs=[pl.BlockSpec(memory_space=pltpu.MemorySpace.VMEM)] * 7,
        out_specs=pl.BlockSpec(memory_space=pltpu.MemorySpace.VMEM),
        out_shape=jax.ShapeDtypeStruct((N, OUT_LANES), jnp.float32),
        cost_estimate=pl.CostEstimate(flops=flops, transcendentals=N * gh,
                                      bytes_accessed=bytes_acc),
    )(xs, ahat, wbig, bbig, sprob, wlin, blin)
    return out[:, :horizon]


# ----------------------------------------------------------------------------
# Pure-JAX reference (full TGCN cell math with H=None) for verification
# ----------------------------------------------------------------------------
def reference(x, edge_index, edge_weight, p):
    N, F, T = x.shape
    ahat = gcn_norm_dense(edge_index, edge_weight, N)
    probs = jax.nn.softmax(p["attention"])
    H0 = jnp.zeros((N, HIDDEN), jnp.float32)      # A3TGCN passes H=None each period
    acc = jnp.zeros((N, HIDDEN), jnp.float32)

    def gconv(xp, w, b):                          # GCNConv: Ahat @ (X W) + b
        return ahat @ (xp @ w) + b

    for t in range(T):
        xp = x[:, :, t].astype(jnp.float32)
        Z = jax.nn.sigmoid(jnp.concatenate([gconv(xp, p["wz"], p["bz"]), H0], axis=1)
                           @ p["wlz"].T + p["blz"])
        R = jax.nn.sigmoid(jnp.concatenate([gconv(xp, p["wr"], p["br"]), H0], axis=1)
                           @ p["wlr"].T + p["blr"])
        Htil = jnp.tanh(jnp.concatenate([gconv(xp, p["wh"], p["bh"]), H0 * R], axis=1)
                        @ p["wlh"].T + p["blh"])
        Hn = Z * H0 + (1.0 - Z) * Htil
        acc = acc + probs[t] * Hn
    return jnp.maximum(acc, 0.0) @ p["wlin"].T + p["blin"]


# ----------------------------------------------------------------------------
if __name__ == "__main__":
    num_nodes = 64
    node_features = 4
    periods = 8
    horizon = 4

    key = jax.random.PRNGKey(0)
    k_x, k_w, k_p = jax.random.split(key, 3)

    # node signal for T periods: [N, F, T]  (A3TGCN indexes X[:, :, period])
    x = jax.random.normal(k_x, (num_nodes, node_features, periods), jnp.float32)

    # bidirectional ring graph with random positive weights
    src = jnp.arange(num_nodes, dtype=jnp.int32)
    dst = (src + 1) % num_nodes
    edge_index = jnp.concatenate(
        [jnp.stack([src, dst]), jnp.stack([dst, src])], axis=1)       # [2, 2N]
    edge_weight = jax.random.uniform(k_w, (2 * num_nodes,), jnp.float32, 0.5, 1.5)

    params = init_params(k_p, node_features, periods, horizon)

    h = a3tgcn_temporal(x, edge_index, edge_weight, params)
    jax.block_until_ready(h)

    h_ref = reference(x, edge_index, edge_weight, params)
    np.testing.assert_allclose(np.asarray(h), np.asarray(h_ref), rtol=5e-3, atol=5e-3)

    print("KERNEL_OK")
</pallas_src>

<mosaic_0001>
module attributes {stable_mosaic.version = 11 : i64} {
  func.func private @main(%arg0: i32) attributes {dimension_semantics = [#tpu.dimension_semantics<core_parallel>], iteration_bounds = array<i64: 2>, tpu.core_type = #tpu.core_type<sc_scalar_subcore>, window_params = []} {
    return
  }
}

module attributes {stable_mosaic.version = 11 : i64} {
  func.func private @main(%arg0: i32) attributes {dimension_semantics = [#tpu.dimension_semantics<core_parallel>], iteration_bounds = array<i64: 2>, tpu.core_type = #tpu.core_type<sc_scalar_subcore>, window_params = []} {
    return
  }
}

module attributes {stable_mosaic.version = 11 : i64} {
  func.func @_a3tgcn_kernel(%arg0: memref<64x64xf32, #tpu.memory_space<vmem>>, %arg1: memref<64x64xf32, #tpu.memory_space<vmem>>, %arg2: memref<64x512xf32, #tpu.memory_space<vmem>>, %arg3: memref<1x512xf32, #tpu.memory_space<vmem>>, %arg4: memref<256x128xf32, #tpu.memory_space<vmem>>, %arg5: memref<128x128xf32, #tpu.memory_space<vmem>>, %arg6: memref<1x128xf32, #tpu.memory_space<vmem>>, %arg7: memref<64x128xf32, #tpu.memory_space<vmem>>) attributes {dimension_semantics = [], scalar_prefetch = 0 : i64, scratch_operands = 0 : i64, tpu.core_type = #tpu.core_type<tc>} {
    %c0 = arith.constant 0 : index
    %c0_0 = arith.constant 0 : index
    %0 = vector.load %arg0[%c0, %c0_0] : memref<64x64xf32, #tpu.memory_space<vmem>>, vector<64x64xf32>
    %c0_1 = arith.constant 0 : index
    %c0_2 = arith.constant 0 : index
    %1 = vector.load %arg2[%c0_1, %c0_2] : memref<64x512xf32, #tpu.memory_space<vmem>>, vector<64x512xf32>
    %cst = arith.constant dense<0.000000e+00> : vector<64x512xf32>
    %2 = tpu.matmul %0, %1, %cst {dimension_numbers = #tpu.dot_dimension_numbers<[1], [0], [0], [1], [0, 0, 1, 1], [], []>} : vector<64x64xf32>, vector<64x512xf32>, vector<64x512xf32> -> vector<64x512xf32>
    %c0_3 = arith.constant 0 : index
    %c0_4 = arith.constant 0 : index
    %3 = vector.load %arg1[%c0_3, %c0_4] : memref<64x64xf32, #tpu.memory_space<vmem>>, vector<64x64xf32>
    %cst_5 = arith.constant dense<0.000000e+00> : vector<64x512xf32>
    %4 = tpu.matmul %3, %2, %cst_5 {dimension_numbers = #tpu.dot_dimension_numbers<[1], [0], [0], [1], [0, 0, 1, 1], [], []>} : vector<64x64xf32>, vector<64x512xf32>, vector<64x512xf32> -> vector<64x512xf32>
    %c0_6 = arith.constant 0 : index
    %c0_7 = arith.constant 0 : index
    %5 = vector.load %arg3[%c0_6, %c0_7] : memref<1x512xf32, #tpu.memory_space<vmem>>, vector<1x512xf32>
    %6 = vector.broadcast %5 : vector<1x512xf32> to vector<64x512xf32>
    %7 = arith.addf %4, %6 : vector<64x512xf32>
    %8 = vector.extract_strided_slice %7 {offsets = [0, 0], sizes = [64, 256], strides = [1, 1]} : vector<64x512xf32> to vector<64x256xf32>
    %9 = arith.negf %8 : vector<64x256xf32>
    %10 = math.exp %9 : vector<64x256xf32>
    %cst_8 = arith.constant 1.000000e+00 : f32
    %11 = vector.broadcast %cst_8 : f32 to vector<64x256xf32>
    %12 = arith.addf %11, %10 : vector<64x256xf32>
    %13 = arith.divf %11, %12 : vector<64x256xf32>
    %14 = vector.extract_strided_slice %7 {offsets = [0, 256], sizes = [64, 256], strides = [1, 1]} : vector<64x512xf32> to vector<64x256xf32>
    %15 = math.tanh %14 : vector<64x256xf32>
    %cst_9 = arith.constant 1.000000e+00 : f32
    %16 = vector.broadcast %cst_9 : f32 to vector<64x256xf32>
    %17 = arith.subf %16, %13 : vector<64x256xf32>
    %18 = arith.mulf %17, %15 : vector<64x256xf32>
    %c0_10 = arith.constant 0 : index
    %c0_11 = arith.constant 0 : index
    %19 = vector.load %arg4[%c0_10, %c0_11] : memref<256x128xf32, #tpu.memory_space<vmem>>, vector<256x128xf32>
    %cst_12 = arith.constant dense<0.000000e+00> : vector<64x128xf32>
    %20 = tpu.matmul %18, %19, %cst_12 {dimension_numbers = #tpu.dot_dimension_numbers<[1], [0], [0], [1], [0, 0, 1, 1], [], []>} : vector<64x256xf32>, vector<256x128xf32>, vector<64x128xf32> -> vector<64x128xf32>
    %cst_13 = arith.constant 0.000000e+00 : f32
    %21 = vector.broadcast %cst_13 : f32 to vector<64x128xf32>
    %22 = arith.maximumf %20, %21 : vector<64x128xf32>
    %c0_14 = arith.constant 0 : index
    %c0_15 = arith.constant 0 : index
    %23 = vector.load %arg5[%c0_14, %c0_15] : memref<128x128xf32, #tpu.memory_space<vmem>>, vector<128x128xf32>
    %cst_16 = arith.constant dense<0.000000e+00> : vector<64x128xf32>
    %24 = tpu.matmul %22, %23, %cst_16 {dimension_numbers = #tpu.dot_dimension_numbers<[1], [0], [0], [1], [0, 0, 1, 1], [], []>} : vector<64x128xf32>, vector<128x128xf32>, vector<64x128xf32> -> vector<64x128xf32>
    %c0_17 = arith.constant 0 : index
    %c0_18 = arith.constant 0 : index
    %25 = vector.load %arg6[%c0_17, %c0_18] : memref<1x128xf32, #tpu.memory_space<vmem>>, vector<1x128xf32>
    %26 = vector.broadcast %25 : vector<1x128xf32> to vector<64x128xf32>
    %27 = arith.addf %24, %26 : vector<64x128xf32>
    %c0_19 = arith.constant 0 : index
    %c0_20 = arith.constant 0 : index
    %28 = vector.load %arg7[%c0_19, %c0_20] : memref<64x128xf32, #tpu.memory_space<vmem>>, vector<64x128xf32>
    tpu.vector_store %arg7[%c0_19, %c0_20], %27 {strides = array<i32>} : memref<64x128xf32, #tpu.memory_space<vmem>>, vector<64x128xf32>,
    return
  }
}

</mosaic_0001>

<llo_original>
// kernel: mul.35
$region0: #{mul.35}
  %s0 = inlined_call_operand.vmem [shape: f32[8,32], index: 0, kind: input, shape index: {}]
  %s1 = inlined_call_operand.vmem [shape: f32[256], index: 1, kind: output, shape index: {}]
  $region1: #{mul.35} parent=0
    #allocation0 [shape = 'u8[4096]{0}', space=vmem, size = 0x1000, scoped, tag = 'scoped mem for output reshape']
    %s2 = smov 3
    %v3 = vld [vmem:[%s0] ss:$4 sm:%s2]
    %vm4 = vcmask 261120
    %5 = vst.msk [vmem:[#allocation0] sm:$0x3] %vm4, %v3
    %s6 = scalar_lea.vmem %s0, 3
    %s7 = smov 3
    %v8 = vld [vmem:[%s6] ss:$4 sm:%s7]
    %9 = vrot.lane.b32.xlu0 %v8, 96
    %v10 = vpop.permute.xlu0 %9
    %vm11 = vcmask 1048320
    %12 = vst.msk [vmem:[#allocation0] sm:$0x3] %vm11, %v10
    %s13 = scalar_lea.vmem %s0, 2
    %s14 = smov 3
    %v15 = vld [vmem:[%s13] ss:$4 sm:%s14]
    %16 = vrot.lane.b32.xlu0 %v15, 64
    %v17 = vpop.permute.xlu0 %16
    %vm18 = vcmask 785920
    %19 = vst.msk [vmem:[#allocation0] sm:$0x3] %vm18, %v17
    %s20 = scalar_lea.vmem %s0, 1
    %s21 = smov 3
    %v22 = vld [vmem:[%s20] ss:$4 sm:%s21]
    %23 = vrot.lane.b32.xlu0 %v22, 32
    %v24 = vpop.permute.xlu0 %23
    %vm25 = vcmask 523520
    %26 = vst.msk [vmem:[#allocation0] sm:$0x3] %vm25, %v24
    %s28 = sshllo.u32 0, 2
    %v30 = vld [vmem:[#allocation0] sm:%s28]
    %s31 = sshllo.u32 0, 2
    %32 = vst [vmem:[%s1] sm:%s31] %v30

// kernel: tile.18
$region0: #{tile.18}
  #allocation0 [shape = 's32[1]{0}', space=sflag, size = 0x4, scoped, tag = 'scoped memory for tile.18']
  %s0 = inlined_call_operand.vmem [shape: f32[32], index: 0, kind: input, shape index: {}]
  %s1 = inlined_call_operand.vmem [shape: f32[8,32], index: 1, kind: output, shape index: {}]
  // Predicated region
  $region2: #{tile.18} parent=0 // pred_check
    _
  $region3: #{tile.18} parent=0 // pred_check_branch
    %3 = sbr.rel (0) target = $region5
  $region4: #{tile.18} parent=0 // pred_region
    _
  $region5: #{tile.18} parent=0 // pred_fallthru
    _
  %v4 = vld [vmem:[%s0] ss:$0 sm:$0xff]
  %5 = vst [vmem:[%s1] sm:$0xff] %v4

// kernel: a3tgcn_temporal.1
$region0: #{a3tgcn_temporal.1}
  #allocation0 [shape = 'u32[]', space=smem, size = 0x4, offset = 0x4, fixed_abs, tag = 'smem constant byte address 0x4 - core index']
  #allocation1 [shape = 'u32[144,128]{1,0:T(1,128)}', space=vmem, size = 0x12000, scoped, tag = 'internal scratch']
  %s0 = inlined_call_operand.vmem [shape: f32[64,64], index: 0, kind: input, shape index: {}]
  %s1 = inlined_call_operand.vmem [shape: f32[64,64], index: 1, kind: input, shape index: {}]
  %s2 = inlined_call_operand.vmem [shape: f32[64,512], index: 2, kind: input, shape index: {}]
  %s3 = inlined_call_operand.vmem [shape: f32[1,512], index: 3, kind: input, shape index: {}]
  %s4 = inlined_call_operand.vmem [shape: f32[256,128], index: 4, kind: input, shape index: {}]
  %s5 = inlined_call_operand.vmem [shape: f32[128,128], index: 5, kind: input, shape index: {}]
  %s6 = inlined_call_operand.vmem [shape: f32[1,128], index: 6, kind: input, shape index: {}]
  %s7 = inlined_call_operand.vmem [shape: f32[64,128], index: 7, kind: output, shape index: {}]
  %s8 = sld [smem:[#allocation0]]
  $region38: #{a3tgcn_temporal.1} parent=0
    _
  %s10 = ssub.s32 1, %s8
  %s11 = scalar_select 0, %s10, %s8
  // Predicated region
  $region2: #{a3tgcn_temporal.1} parent=0 // pred_check
    _
  $region3: #{a3tgcn_temporal.1} parent=0 // pred_check_branch
    %13 = sbr.rel (0) target = $region5
  $region4: #{a3tgcn_temporal.1} parent=0 // pred_region
    _
  $region5: #{a3tgcn_temporal.1} parent=0 // pred_fallthru
    _
  // Predicated region
  $region6: #{a3tgcn_temporal.1} parent=0 // pred_check
    _
  $region7: #{a3tgcn_temporal.1} parent=0 // pred_check_branch
    %15 = sbr.rel (0) target = $region9
  $region8: #{a3tgcn_temporal.1} parent=0 // pred_region
    _
  $region9: #{a3tgcn_temporal.1} parent=0 // pred_fallthru
    _
  // Predicated region
  $region10: #{a3tgcn_temporal.1} parent=0 // pred_check
    _
  $region11: #{a3tgcn_temporal.1} parent=0 // pred_check_branch
    %17 = sbr.rel (0) target = $region13
  $region12: #{a3tgcn_temporal.1} parent=0 // pred_region
    _
  $region13: #{a3tgcn_temporal.1} parent=0 // pred_fallthru
    _
  // Predicated region
  $region14: #{a3tgcn_temporal.1} parent=0 // pred_check
    _
  $region15: #{a3tgcn_temporal.1} parent=0 // pred_check_branch
    %19 = sbr.rel (0) target = $region17
  $region16: #{a3tgcn_temporal.1} parent=0 // pred_region
    _
  $region17: #{a3tgcn_temporal.1} parent=0 // pred_fallthru
    _
  // Predicated region
  $region18: #{a3tgcn_temporal.1} parent=0 // pred_check
    _
  $region19: #{a3tgcn_temporal.1} parent=0 // pred_check_branch
    %21 = sbr.rel (0) target = $region21
  $region20: #{a3tgcn_temporal.1} parent=0 // pred_region
    _
  $region21: #{a3tgcn_temporal.1} parent=0 // pred_fallthru
    _
  // Predicated region
  $region22: #{a3tgcn_temporal.1} parent=0 // pred_check
    _
  $region23: #{a3tgcn_temporal.1} parent=0 // pred_check_branch
    %23 = sbr.rel (0) target = $region25
  $region24: #{a3tgcn_temporal.1} parent=0 // pred_region
    _
  $region25: #{a3tgcn_temporal.1} parent=0 // pred_fallthru
    _
  // Predicated region
  $region26: #{a3tgcn_temporal.1} parent=0 // pred_check
    _
  $region27: #{a3tgcn_temporal.1} parent=0 // pred_check_branch
    %25 = sbr.rel (0) target = $region29
  $region28: #{a3tgcn_temporal.1} parent=0 // pred_region
    _
  $region29: #{a3tgcn_temporal.1} parent=0 // pred_fallthru
    _
  %v26 = vld [vmem:[%s0] sm:$0xff]
  %v27 = vld [vmem:[%s0 + $0x8] sm:$0xff]
  %v28 = vld [vmem:[%s0 + $0x10] sm:$0xff]
  %v29 = vld [vmem:[%s0 + $0x18] sm:$0xff]
  %v30 = vld [vmem:[%s0 + $0x20] sm:$0xff]
  %v31 = vld [vmem:[%s0 + $0x28] sm:$0xff]
  %v32 = vld [vmem:[%s0 + $0x30] sm:$0xff]
  %v33 = vld [vmem:[%s0 + $0x38] sm:$0xff]
  %v34 = vld [vmem:[%s2] sm:$0xff]
  %v35 = vld [vmem:[%s2 + $0x8] sm:$0xff]
  %v36 = vld [vmem:[%s2 + $0x10] sm:$0xff]
  %v37 = vld [vmem:[%s2 + $0x18] sm:$0xff]
  %v38 = vld [vmem:[%s2 + $0x20] sm:$0xff]
  %v39 = vld [vmem:[%s2 + $0x28] sm:$0xff]
  %v40 = vld [vmem:[%s2 + $0x30] sm:$0xff]
  %v41 = vld [vmem:[%s2 + $0x38] sm:$0xff]
  %v42 = vld [vmem:[%s2 + $0x40] sm:$0xff]
  %v43 = vld [vmem:[%s2 + $0x48] sm:$0xff]
  %v44 = vld [vmem:[%s2 + $0x50] sm:$0xff]
  %v45 = vld [vmem:[%s2 + $0x58] sm:$0xff]
  %v46 = vld [vmem:[%s2 + $0x60] sm:$0xff]
  %v47 = vld [vmem:[%s2 + $0x68] sm:$0xff]
  %v48 = vld [vmem:[%s2 + $0x70] sm:$0xff]
  %v49 = vld [vmem:[%s2 + $0x78] sm:$0xff]
  %v50 = vld [vmem:[%s2 + $0x80] sm:$0xff]
  %v51 = vld [vmem:[%s2 + $0x88] sm:$0xff]
  %v52 = vld [vmem:[%s2 + $0x90] sm:$0xff]
  %v53 = vld [vmem:[%s2 + $0x98] sm:$0xff]
  %v54 = vld [vmem:[%s2 + $0xa0] sm:$0xff]
  %v55 = vld [vmem:[%s2 + $0xa8] sm:$0xff]
  %v56 = vld [vmem:[%s2 + $0xb0] sm:$0xff]
  %v57 = vld [vmem:[%s2 + $0xb8] sm:$0xff]
  %v58 = vld [vmem:[%s2 + $0xc0] sm:$0xff]
  %v59 = vld [vmem:[%s2 + $0xc8] sm:$0xff]
  %v60 = vld [vmem:[%s2 + $0xd0] sm:$0xff]
  %v61 = vld [vmem:[%s2 + $0xd8] sm:$0xff]
  %v62 = vld [vmem:[%s2 + $0xe0] sm:$0xff]
  %v63 = vld [vmem:[%s2 + $0xe8] sm:$0xff]
  %v64 = vld [vmem:[%s2 + $0xf0] sm:$0xff]
  %v65 = vld [vmem:[%s2 + $0xf8] sm:$0xff]
  %vm66 = vcmask 523264
  %v68 = vsel %vm66, %v26, 0
  %v71 = vsel %vm66, %v27, 0
  %v74 = vsel %vm66, %v28, 0
  %v77 = vsel %vm66, %v29, 0
  %v80 = vsel %vm66, %v30, 0
  %v83 = vsel %vm66, %v31, 0
  %v86 = vsel %vm66, %v32, 0
  %v89 = vsel %vm66, %v33, 0
  %91 = vmatprep.subr.mxu0 %v35
  %92 = vmatpush1.msra.mxu0 %v34
  %93 = vmatprep.subr.mxu0 %v39
  %94 = vmatpush1.msra.mxu0 %v38
  %95 = vmatprep.subr.mxu0 %v43
  %96 = vmatpush1.msra.mxu0 %v42
  %97 = vmatprep.subr.mxu0 %v47
  %98 = vmatpush1.msra.mxu0 %v46
  %99 = vmatprep.subr.mxu0 %v51
  %100 = vmatpush1.msra.mxu0 %v50
  %101 = vmatprep.subr.mxu0 %v55
  %102 = vmatpush1.msra.mxu0 %v54
  %103 = vmatprep.subr.mxu0 %v59
  %104 = vmatpush1.msra.mxu0 %v58
  %105 = vmatprep.subr.mxu0 %v63
  %106 = vmatpush1.msra.mxu0 %v62
  %107 = vmatprep.subr.mxu0 0.0
  %108 = vmatpush1.msra.mxu0 0.0
  %109 = vmatprep.subr.mxu0 0.0
  %110 = vmatpush1.msra.mxu0 0.0
  %111 = vmatprep.subr.mxu0 0.0
  %112 = vmatpush1.msra.mxu0 0.0
  %113 = vmatprep.subr.mxu0 0.0
  %114 = vmatpush1.msra.mxu0 0.0
  %115 = vmatprep.subr.mxu0 0.0
  %116 = vmatpush1.msra.mxu0 0.0
  %117 = vmatprep.subr.mxu0 0.0
  %118 = vmatpush1.msra.mxu0 0.0
  %119 = vmatprep.subr.mxu0 0.0
  %120 = vmatpush1.msra.mxu0 0.0
  %121 = vmatprep.subr.mxu0 0.0
  %122 = vmatpush1.msra.mxu0 0.0
  %123 = vmatprep.subr.mxu0 0.0
  %124 = vmatpush1.msra.mxu0 0.0
  %125 = vmatprep.subr.mxu0 0.0
  %126 = vmatpush1.msra.mxu0 0.0
  %127 = vmatprep.subr.mxu0 0.0
  %128 = vmatpush1.msra.mxu0 0.0
  %129 = vmatprep.subr.mxu0 0.0
  %130 = vmatpush1.msra.mxu0 0.0
  %131 = vmatprep.subr.mxu0 0.0
  %132 = vmatpush1.msra.mxu0 0.0
  %133 = vmatprep.subr.mxu0 0.0
  %134 = vmatpush1.msra.mxu0 0.0
  %135 = vmatprep.subr.mxu0 0.0
  %136 = vmatpush1.msra.mxu0 0.0
  %137 = vmatprep.subr.mxu0 0.0
  %138 = vmatpush1.msra.mxu0 0.0
  %139 = vmatprep.subr.mxu0 0.0
  %140 = vmatpush1.msra.mxu0 0.0
  %141 = vmatprep.subr.mxu0 0.0
  %142 = vmatpush1.msra.mxu0 0.0
  %143 = vmatprep.subr.mxu0 0.0
  %144 = vmatpush1.msra.mxu0 0.0
  %145 = vmatprep.subr.mxu0 0.0
  %146 = vmatpush1.msra.mxu0 0.0
  %147 = vmatprep.subr.mxu0 0.0
  %148 = vmatpush1.msra.mxu0 0.0
  %149 = vmatprep.subr.mxu0 0.0
  %150 = vmatpush1.msra.mxu0 0.0
  %151 = vmatprep.subr.mxu0 0.0
  %152 = vmatpush1.msra.mxu0 0.0
  %153 = vmatprep.subr.mxu0 0.0
  %154 = vmatpush1.msra.mxu0 0.0
  %155 = vmatprep.mubr.f32.mxu0 0.0
  %156 = vmatmul.mubr.f32.gmra.mrb[0].mxu0 %v68
  %v157 = vpop.f32.mrb[0].mxu0
  %v158 = vadd.f32 0.0, %v157
  %v159 = vpop.f32.mrb[0].mxu0
  %v160 = vadd.f32 0.0, %v159
  %161 = vmatprep.mubr.f32.mxu0 0.0
  %162 = vmatmul.mubr.f32.gmra.mrb[0].mxu0 %v71
  %v163 = vpop.f32.mrb[0].mxu0
  %v164 = vadd.f32 0.0, %v163
  %v165 = vpop.f32.mrb[0].mxu0
  %v166 = vadd.f32 0.0, %v165
  %167 = vmatprep.mubr.f32.mxu0 0.0
  %168 = vmatmul.mubr.f32.gmra.mrb[0].mxu0 %v74
  %v169 = vpop.f32.mrb[0].mxu0
  %v170 = vadd.f32 0.0, %v169
  %v171 = vpop.f32.mrb[0].mxu0
  %v172 = vadd.f32 0.0, %v171
  %173 = vmatprep.mubr.f32.mxu0 0.0
  %174 = vmatmul.mubr.f32.gmra.mrb[0].mxu0 %v77
  %v175 = vpop.f32.mrb[0].mxu0
  %v176 = vadd.f32 0.0, %v175
  %v177 = vpop.f32.mrb[0].mxu0
  %v178 = vadd.f32 0.0, %v177
  %179 = vmatprep.mubr.f32.mxu0 0.0
  %180 = vmatmul.mubr.f32.gmra.mrb[0].mxu0 %v80
  %v181 = vpop.f32.mrb[0].mxu0
  %v182 = vadd.f32 0.0, %v181
  %v183 = vpop.f32.mrb[0].mxu0
  %v184 = vadd.f32 0.0, %v183
  %185 = vmatprep.mubr.f32.mxu0 0.0
  %186 = vmatmul.mubr.f32.gmra.mrb[0].mxu0 %v83
  %v187 = vpop.f32.mrb[0].mxu0
  %v188 = vadd.f32 0.0, %v187
  %v189 = vpop.f32.mrb[0].mxu0
  %v190 = vadd.f32 0.0, %v189
  %191 = vmatprep.mubr.f32.mxu0 0.0
  %192 = vmatmul.mubr.f32.gmra.mrb[0].mxu0 %v86
  %v193 = vpop.f32.mrb[0].mxu0
  %v194 = vadd.f32 0.0, %v193
  %v195 = vpop.f32.mrb[0].mxu0
  %v196 = vadd.f32 0.0, %v195
  %197 = vmatprep.mubr.f32.mxu0 0.0
  %198 = vmatmul.mubr.f32.gmra.mrb[0].mxu0 %v89
  %v199 = vpop.f32.mrb[0].mxu0
  %v200 = vadd.f32 0.0, %v199
  %v201 = vpop.f32.mrb[0].mxu0
  %v202 = vadd.f32 0.0, %v201
  %203 = vdwg.mxu0
  %204 = vmatprep.subr.mxu0 %v37
  %205 = vmatpush1.msra.mxu0 %v36
  %206 = vmatprep.subr.mxu0 %v41
  %207 = vmatpush1.msra.mxu0 %v40
  %208 = vmatprep.subr.mxu0 %v45
  %209 = vmatpush1.msra.mxu0 %v44
  %210 = vmatprep.subr.mxu0 %v49
  %211 = vmatpush1.msra.mxu0 %v48
  %212 = vmatprep.subr.mxu0 %v53
  %213 = vmatpush1.msra.mxu0 %v52
  %214 = vmatprep.subr.mxu0 %v57
  %215 = vmatpush1.msra.mxu0 %v56
  %216 = vmatprep.subr.mxu0 %v61
  %217 = vmatpush1.msra.mxu0 %v60
  %218 = vmatprep.subr.mxu0 %v65
  %219 = vmatpush1.msra.mxu0 %v64
  %220 = vmatprep.subr.mxu0 0.0
  %221 = vmatpush1.msra.mxu0 0.0
  %222 = vmatprep.subr.mxu0 0.0
  %223 = vmatpush1.msra.mxu0 0.0
  %224 = vmatprep.subr.mxu0 0.0
  %225 = vmatpush1.msra.mxu0 0.0
  %226 = vmatprep.subr.mxu0 0.0
  %227 = vmatpush1.msra.mxu0 0.0
  %228 = vmatprep.subr.mxu0 0.0
  %229 = vmatpush1.msra.mxu0 0.0
  %230 = vmatprep.subr.mxu0 0.0
  %231 = vmatpush1.msra.mxu0 0.0
  %232 = vmatprep.subr.mxu0 0.0
  %233 = vmatpush1.msra.mxu0 0.0
  %234 = vmatprep.subr.mxu0 0.0
  %235 = vmatpush1.msra.mxu0 0.0
  %236 = vmatprep.subr.mxu0 0.0
  %237 = vmatpush1.msra.mxu0 0.0
  %238 = vmatprep.subr.mxu0 0.0
  %239 = vmatpush1.msra.mxu0 0.0
  %240 = vmatprep.subr.mxu0 0.0
  %241 = vmatpush1.msra.mxu0 0.0
  %242 = vmatprep.subr.mxu0 0.0
  %243 = vmatpush1.msra.mxu0 0.0
  %244 = vmatprep.subr.mxu0 0.0
  %245 = vmatpush1.msra.mxu0 0.0
  %246 = vmatprep.subr.mxu0 0.0
  %247 = vmatpush1.msra.mxu0 0.0
  %248 = vmatprep.subr.mxu0 0.0
  %249 = vmatpush1.msra.mxu0 0.0
  %250 = vmatprep.subr.mxu0 0.0
  %251 = vmatpush1.msra.mxu0 0.0
  %252 = vmatprep.subr.mxu0 0.0
  %253 = vmatpush1.msra.mxu0 0.0
  %254 = vmatprep.subr.mxu0 0.0
  %255 = vmatpush1.msra.mxu0 0.0
  %256 = vmatprep.subr.mxu0 0.0
  %257 = vmatpush1.msra.mxu0 0.0
  %258 = vmatprep.subr.mxu0 0.0
  %259 = vmatpush1.msra.mxu0 0.0
  %260 = vmatprep.subr.mxu0 0.0
  %261 = vmatpush1.msra.mxu0 0.0
  %262 = vmatprep.subr.mxu0 0.0
  %263 = vmatpush1.msra.mxu0 0.0
  %264 = vmatprep.subr.mxu0 0.0
  %265 = vmatpush1.msra.mxu0 0.0
  %266 = vmatprep.subr.mxu0 0.0
  %267 = vmatpush1.msra.mxu0 0.0
  %268 = vmatprep.mubr.f32.mxu0 0.0
  %269 = vmatmul.mubr.f32.gmra.mrb[0].mxu0 %v68
  %v270 = vpop.f32.mrb[0].mxu0
  %v271 = vadd.f32 0.0, %v270
  %v272 = vpop.f32.mrb[0].mxu0
  %v273 = vadd.f32 0.0, %v272
  %274 = vmatprep.mubr.f32.mxu0 0.0
  %275 = vmatmul.mubr.f32.gmra.mrb[0].mxu0 %v71
  %v276 = vpop.f32.mrb[0].mxu0
  %v277 = vadd.f32 0.0, %v276
  %v278 = vpop.f32.mrb[0].mxu0
  %v279 = vadd.f32 0.0, %v278
  %280 = vmatprep.mubr.f32.mxu0 0.0
  %281 = vmatmul.mubr.f32.gmra.mrb[0].mxu0 %v74
  %v282 = vpop.f32.mrb[0].mxu0
  %v283 = vadd.f32 0.0, %v282
  %v284 = vpop.f32.mrb[0].mxu0
  %v285 = vadd.f32 0.0, %v284
  %286 = vmatprep.mubr.f32.mxu0 0.0
  %287 = vmatmul.mubr.f32.gmra.mrb[0].mxu0 %v77
  %v288 = vpop.f32.mrb[0].mxu0
  %v289 = vadd.f32 0.0, %v288
  %v290 = vpop.f32.mrb[0].mxu0
  %v291 = vadd.f32 0.0, %v290
  %292 = vmatprep.mubr.f32.mxu0 0.0
  %293 = vmatmul.mubr.f32.gmra.mrb[0].mxu0 %v80
  %v294 = vpop.f32.mrb[0].mxu0
  %v295 = vadd.f32 0.0, %v294
  %v296 = vpop.f32.mrb[0].mxu0
  %v297 = vadd.f32 0.0, %v296
  %298 = vmatprep.mubr.f32.mxu0 0.0
  %299 = vmatmul.mubr.f32.gmra.mrb[0].mxu0 %v83
  %v300 = vpop.f32.mrb[0].mxu0
  %v301 = vadd.f32 0.0, %v300
  %v302 = vpop.f32.mrb[0].mxu0
  %v303 = vadd.f32 0.0, %v302
  %304 = vmatprep.mubr.f32.mxu0 0.0
  %305 = vmatmul.mubr.f32.gmra.mrb[0].mxu0 %v86
  %v306 = vpop.f32.mrb[0].mxu0
  %v307 = vadd.f32 0.0, %v306
  %v308 = vpop.f32.mrb[0].mxu0
  %v309 = vadd.f32 0.0, %v308
  %310 = vmatprep.mubr.f32.mxu0 0.0
  %311 = vmatmul.mubr.f32.gmra.mrb[0].mxu0 %v89
  %v312 = vpop.f32.mrb[0].mxu0
  %v313 = vadd.f32 0.0, %v312
  %v314 = vpop.f32.mrb[0].mxu0
  %v315 = vadd.f32 0.0, %v314
  %316 = vdwg.mxu0
  %v317 = vld [vmem:[%s1] sm:$0xff]
  %v318 = vld [vmem:[%s1 + $0x8] sm:$0xff]
  %v319 = vld [vmem:[%s1 + $0x10] sm:$0xff]
  %v320 = vld [vmem:[%s1 + $0x18] sm:$0xff]
  %v321 = vld [vmem:[%s1 + $0x20] sm:$0xff]
  %v322 = vld [vmem:[%s1 + $0x28] sm:$0xff]
  %v323 = vld [vmem:[%s1 + $0x30] sm:$0xff]
  %v324 = vld [vmem:[%s1 + $0x38] sm:$0xff]
  %v325 = vld [vmem:[%s3] sm:$0xf]
  %v327 = vlaneseq
  %v328 = vshrl.u32 %v327, 7
  %v329 = vsub.s32 0, %v328
  %v330 = vrot.slane %v325, %v329
  %v331 = vlaneseq
  %v332 = vshrl.u32 %v331, 7
  %v333 = vsub.s32 1, %v332
  %v334 = vrot.slane %v325, %v333
  %v335 = vlaneseq
  %v336 = vshrl.u32 %v335, 7
  %v337 = vsub.s32 2, %v336
  %v338 = vrot.slane %v325, %v337
  %v339 = vlaneseq
  %v340 = vshrl.u32 %v339, 7
  %v341 = vsub.s32 3, %v340
  %v342 = vrot.slane %v325, %v341
  %v348 = vsel %vm66, %v317, 0
  %v351 = vsel %vm66, %v318, 0
  %v354 = vsel %vm66, %v319, 0
  %v357 = vsel %vm66, %v320, 0
  %v360 = vsel %vm66, %v321, 0
  %v363 = vsel %vm66, %v322, 0
  %v366 = vsel %vm66, %v323, 0
  %v369 = vsel %vm66, %v324, 0
  %371 = vmatprep.subr.mxu0 %v160
  %372 = vmatpush1.msra.mxu0 %v158
  %373 = vmatprep.subr.mxu0 %v166
  %374 = vmatpush1.msra.mxu0 %v164
  %375 = vmatprep.subr.mxu0 %v172
  %376 = vmatpush1.msra.mxu0 %v170
  %377 = vmatprep.subr.mxu0 %v178
  %378 = vmatpush1.msra.mxu0 %v176
  %379 = vmatprep.subr.mxu0 %v184
  %380 = vmatpush1.msra.mxu0 %v182
  %381 = vmatprep.subr.mxu0 %v190
  %382 = vmatpush1.msra.mxu0 %v188
  %383 = vmatprep.subr.mxu0 %v196
  %384 = vmatpush1.msra.mxu0 %v194
  %385 = vmatprep.subr.mxu0 %v202
  %386 = vmatpush1.msra.mxu0 %v200
  %387 = vmatprep.subr.mxu0 0.0
  %388 = vmatpush1.msra.mxu0 0.0
  %389 = vmatprep.subr.mxu0 0.0
  %390 = vmatpush1.msra.mxu0 0.0
  %391 = vmatprep.subr.mxu0 0.0
  %392 = vmatpush1.msra.mxu0 0.0
  %393 = vmatprep.subr.mxu0 0.0
  %394 = vmatpush1.msra.mxu0 0.0
  %395 = vmatprep.subr.mxu0 0.0
  %396 = vmatpush1.msra.mxu0 0.0
  %397 = vmatprep.subr.mxu0 0.0
  %398 = vmatpush1.msra.mxu0 0.0
  %399 = vmatprep.subr.mxu0 0.0
  %400 = vmatpush1.msra.mxu0 0.0
  %401 = vmatprep.subr.mxu0 0.0
  %402 = vmatpush1.msra.mxu0 0.0
  %403 = vmatprep.subr.mxu0 0.0
  %404 = vmatpush1.msra.mxu0 0.0
  %405 = vmatprep.subr.mxu0 0.0
  %406 = vmatpush1.msra.mxu0 0.0
  %407 = vmatprep.subr.mxu0 0.0
  %408 = vmatpush1.msra.mxu0 0.0
  %409 = vmatprep.subr.mxu0 0.0
  %410 = vmatpush1.msra.mxu0 0.0
  %411 = vmatprep.subr.mxu0 0.0
  %412 = vmatpush1.msra.mxu0 0.0
  %413 = vmatprep.subr.mxu0 0.0
  %414 = vmatpush1.msra.mxu0 0.0
  %415 = vmatprep.subr.mxu0 0.0
  %416 = vmatpush1.msra.mxu0 0.0
  %417 = vmatprep.subr.mxu0 0.0
  %418 = vmatpush1.msra.mxu0 0.0
  %419 = vmatprep.subr.mxu0 0.0
  %420 = vmatpush1.msra.mxu0 0.0
  %421 = vmatprep.subr.mxu0 0.0
  %422 = vmatpush1.msra.mxu0 0.0
  %423 = vmatprep.subr.mxu0 0.0
  %424 = vmatpush1.msra.mxu0 0.0
  %425 = vmatprep.subr.mxu0 0.0
  %426 = vmatpush1.msra.mxu0 0.0
  %427 = vmatprep.subr.mxu0 0.0
  %428 = vmatpush1.msra.mxu0 0.0
  %429 = vmatprep.subr.mxu0 0.0
  %430 = vmatpush1.msra.mxu0 0.0
  %431 = vmatprep.subr.mxu0 0.0
  %432 = vmatpush1.msra.mxu0 0.0
  %433 = vmatprep.subr.mxu0 0.0
  %434 = vmatpush1.msra.mxu0 0.0
  %435 = vmatprep.mubr.f32.mxu0 0.0
  %436 = vmatmul.mubr.f32.gmra.mrb[0].mxu0 %v348
  %v437 = vpop.f32.mrb[0].mxu0
  %v438 = vadd.f32 %v330, %v437
  %v439 = vpop.f32.mrb[0].mxu0
  %v440 = vadd.f32 %v334, %v439
  %441 = vmatprep.mubr.f32.mxu0 0.0
  %442 = vmatmul.mubr.f32.gmra.mrb[0].mxu0 %v351
  %v443 = vpop.f32.mrb[0].mxu0
  %v444 = vadd.f32 %v330, %v443
  %v445 = vpop.f32.mrb[0].mxu0
  %v446 = vadd.f32 %v334, %v445
  %447 = vmatprep.mubr.f32.mxu0 0.0
  %448 = vmatmul.mubr.f32.gmra.mrb[0].mxu0 %v354
  %v449 = vpop.f32.mrb[0].mxu0
  %v450 = vadd.f32 %v330, %v449
  %v451 = vpop.f32.mrb[0].mxu0
  %v452 = vadd.f32 %v334, %v451
  %453 = vmatprep.mubr.f32.mxu0 0.0
  %454 = vmatmul.mubr.f32.gmra.mrb[0].mxu0 %v357
  %v455 = vpop.f32.mrb[0].mxu0
  %v456 = vadd.f32 %v330, %v455
  %v457 = vpop.f32.mrb[0].mxu0
  %v458 = vadd.f32 %v334, %v457
  %459 = vmatprep.mubr.f32.mxu0 0.0
  %460 = vmatmul.mubr.f32.gmra.mrb[0].mxu0 %v360
  %v461 = vpop.f32.mrb[0].mxu0
  %v462 = vadd.f32 %v330, %v461
  %v463 = vpop.f32.mrb[0].mxu0
  %v464 = vadd.f32 %v334, %v463
  %465 = vmatprep.mubr.f32.mxu0 0.0
  %466 = vmatmul.mubr.f32.gmra.mrb[0].mxu0 %v363
  %v467 = vpop.f32.mrb[0].mxu0
  %v468 = vadd.f32 %v330, %v467
  %v469 = vpop.f32.mrb[0].mxu0
  %v470 = vadd.f32 %v334, %v469
  %471 = vmatprep.mubr.f32.mxu0 0.0
  %472 = vmatmul.mubr.f32.gmra.mrb[0].mxu0 %v366
  %v473 = vpop.f32.mrb[0].mxu0
  %v474 = vadd.f32 %v330, %v473
  %v475 = vpop.f32.mrb[0].mxu0
  %v476 = vadd.f32 %v334, %v475
  %477 = vmatprep.mubr.f32.mxu0 0.0
  %478 = vmatmul.mubr.f32.gmra.mrb[0].mxu0 %v369
  %v479 = vpop.f32.mrb[0].mxu0
  %v480 = vadd.f32 %v330, %v479
  %v481 = vpop.f32.mrb[0].mxu0
  %v482 = vadd.f32 %v334, %v481
  %483 = vdwg.mxu0
  %484 = vmatprep.subr.mxu0 %v273
  %485 = vmatpush1.msra.mxu0 %v271
  %486 = vmatprep.subr.mxu0 %v279
  %487 = vmatpush1.msra.mxu0 %v277
  %488 = vmatprep.subr.mxu0 %v285
  %489 = vmatpush1.msra.mxu0 %v283
  %490 = vmatprep.subr.mxu0 %v291
  %491 = vmatpush1.msra.mxu0 %v289
  %492 = vmatprep.subr.mxu0 %v297
  %493 = vmatpush1.msra.mxu0 %v295
  %494 = vmatprep.subr.mxu0 %v303
  %495 = vmatpush1.msra.mxu0 %v301
  %496 = vmatprep.subr.mxu0 %v309
  %497 = vmatpush1.msra.mxu0 %v307
  %498 = vmatprep.subr.mxu0 %v315
  %499 = vmatpush1.msra.mxu0 %v313
  %500 = vmatprep.subr.mxu0 0.0
  %501 = vmatpush1.msra.mxu0 0.0
  %502 = vmatprep.subr.mxu0 0.0
  %503 = vmatpush1.msra.mxu0 0.0
  %504 = vmatprep.subr.mxu0 0.0
  %505 = vmatpush1.msra.mxu0 0.0
  %506 = vmatprep.subr.mxu0 0.0
  %507 = vmatpush1.msra.mxu0 0.0
  %508 = vmatprep.subr.mxu0 0.0
  %509 = vmatpush1.msra.mxu0 0.0
  %510 = vmatprep.subr.mxu0 0.0
  %511 = vmatpush1.msra.mxu0 0.0
  %512 = vmatprep.subr.mxu0 0.0
  %513 = vmatpush1.msra.mxu0 0.0
  %514 = vmatprep.subr.mxu0 0.0
  %515 = vmatpush1.msra.mxu0 0.0
  %516 = vmatprep.subr.mxu0 0.0
  %517 = vmatpush1.msra.mxu0 0.0
  %518 = vmatprep.subr.mxu0 0.0
  %519 = vmatpush1.msra.mxu0 0.0
  %520 = vmatprep.subr.mxu0 0.0
  %521 = vmatpush1.msra.mxu0 0.0
  %522 = vmatprep.subr.mxu0 0.0
  %523 = vmatpush1.msra.mxu0 0.0
  %524 = vmatprep.subr.mxu0 0.0
  %525 = vmatpush1.msra.mxu0 0.0
  %526 = vmatprep.subr.mxu0 0.0
  %527 = vmatpush1.msra.mxu0 0.0
  %528 = vmatprep.subr.mxu0 0.0
  %529 = vmatpush1.msra.mxu0 0.0
  %530 = vmatprep.subr.mxu0 0.0
  %531 = vmatpush1.msra.mxu0 0.0
  %532 = vmatprep.subr.mxu0 0.0
  %533 = vmatpush1.msra.mxu0 0.0
  %534 = vmatprep.subr.mxu0 0.0
  %535 = vmatpush1.msra.mxu0 0.0
  %536 = vmatprep.subr.mxu0 0.0
  %537 = vmatpush1.msra.mxu0 0.0
  %538 = vmatprep.subr.mxu0 0.0
  %539 = vmatpush1.msra.mxu0 0.0
  %540 = vmatprep.subr.mxu0 0.0
  %541 = vmatpush1.msra.mxu0 0.0
  %542 = vmatprep.subr.mxu0 0.0
  %543 = vmatpush1.msra.mxu0 0.0
  %544 = vmatprep.subr.mxu0 0.0
  %545 = vmatpush1.msra.mxu0 0.0
  %546 = vmatprep.subr.mxu0 0.0
  %547 = vmatpush1.msra.mxu0 0.0
  %548 = vmatprep.mubr.f32.mxu0 0.0
  %549 = vmatmul.mubr.f32.gmra.mrb[0].mxu0 %v348
  %v550 = vpop.f32.mrb[0].mxu0
  %v551 = vadd.f32 %v338, %v550
  %v552 = vpop.f32.mrb[0].mxu0
  %v553 = vadd.f32 %v342, %v552
  %554 = vmatprep.mubr.f32.mxu0 0.0
  %555 = vmatmul.mubr.f32.gmra.mrb[0].mxu0 %v351
  %v556 = vpop.f32.mrb[0].mxu0
  %v557 = vadd.f32 %v338, %v556
  %v558 = vpop.f32.mrb[0].mxu0
  %v559 = vadd.f32 %v342, %v558
  %560 = vmatprep.mubr.f32.mxu0 0.0
  %561 = vmatmul.mubr.f32.gmra.mrb[0].mxu0 %v354
  %v562 = vpop.f32.mrb[0].mxu0
  %v563 = vadd.f32 %v338, %v562
  %v564 = vpop.f32.mrb[0].mxu0
  %v565 = vadd.f32 %v342, %v564
  %566 = vmatprep.mubr.f32.mxu0 0.0
  %567 = vmatmul.mubr.f32.gmra.mrb[0].mxu0 %v357
  %v568 = vpop.f32.mrb[0].mxu0
  %v569 = vadd.f32 %v338, %v568
  %v570 = vpop.f32.mrb[0].mxu0
  %v571 = vadd.f32 %v342, %v570
  %572 = vmatprep.mubr.f32.mxu0 0.0
  %573 = vmatmul.mubr.f32.gmra.mrb[0].mxu0 %v360
  %v574 = vpop.f32.mrb[0].mxu0
  %v575 = vadd.f32 %v338, %v574
  %v576 = vpop.f32.mrb[0].mxu0
  %v577 = vadd.f32 %v342, %v576
  %578 = vmatprep.mubr.f32.mxu0 0.0
  %579 = vmatmul.mubr.f32.gmra.mrb[0].mxu0 %v363
  %v580 = vpop.f32.mrb[0].mxu0
  %v581 = vadd.f32 %v338, %v580
  %v582 = vpop.f32.mrb[0].mxu0
  %v583 = vadd.f32 %v342, %v582
  %584 = vmatprep.mubr.f32.mxu0 0.0
  %585 = vmatmul.mubr.f32.gmra.mrb[0].mxu0 %v366
  %v586 = vpop.f32.mrb[0].mxu0
  %v587 = vadd.f32 %v338, %v586
  %v588 = vpop.f32.mrb[0].mxu0
  %v589 = vadd.f32 %v342, %v588
  %590 = vmatprep.mubr.f32.mxu0 0.0
  %591 = vmatmul.mubr.f32.gmra.mrb[0].mxu0 %v369
  %v592 = vpop.f32.mrb[0].mxu0
  %v593 = vadd.f32 %v338, %v592
  %v594 = vpop.f32.mrb[0].mxu0
  %v595 = vadd.f32 %v342, %v594
  %596 = vdwg.mxu0
  %v597 = vxor.u32 %v438, 2147483648
  %v598 = vxor.u32 %v440, 2147483648
  %v599 = vxor.u32 %v444, 2147483648
  %v600 = vxor.u32 %v446, 2147483648
  %v601 = vxor.u32 %v450, 2147483648
  %v602 = vxor.u32 %v452, 2147483648
  %v603 = vxor.u32 %v456, 2147483648
  %v604 = vxor.u32 %v458, 2147483648
  %v605 = vxor.u32 %v462, 2147483648
  %v606 = vxor.u32 %v464, 2147483648
  %v607 = vxor.u32 %v468, 2147483648
  %v608 = vxor.u32 %v470, 2147483648
  %v609 = vxor.u32 %v474, 2147483648
  %v610 = vxor.u32 %v476, 2147483648
  %v611 = vxor.u32 %v480, 2147483648
  %v612 = vxor.u32 %v482, 2147483648
  %v613 = vmul.f32 %v597, 1.442695
  %v614 = vpow.pop %v613
  %v615 = vmul.f32 %v598, 1.442695
  %v616 = vpow.pop %v615
  %v617 = vmul.f32 %v599, 1.442695
  %v618 = vpow.pop %v617
  %v619 = vmul.f32 %v600, 1.442695
  %v620 = vpow.pop %v619
  %v621 = vmul.f32 %v601, 1.442695
  %v622 = vpow.pop %v621
  %v623 = vmul.f32 %v602, 1.442695
  %v624 = vpow.pop %v623
  %v625 = vmul.f32 %v603, 1.442695
  %v626 = vpow.pop %v625
  %v627 = vmul.f32 %v604, 1.442695
  %v628 = vpow.pop %v627
  %v629 = vmul.f32 %v605, 1.442695
  %v630 = vpow.pop %v629
  %v631 = vmul.f32 %v606, 1.442695
  %v632 = vpow.pop %v631
  %v633 = vmul.f32 %v607, 1.442695
  %v634 = vpow.pop %v633
  %v635 = vmul.f32 %v608, 1.442695
  %v636 = vpow.pop %v635
  %v637 = vmul.f32 %v609, 1.442695
  %v638 = vpow.pop %v637
  %v639 = vmul.f32 %v610, 1.442695
  %v640 = vpow.pop %v639
  %v641 = vmul.f32 %v611, 1.442695
  %v642 = vpow.pop %v641
  %v643 = vmul.f32 %v612, 1.442695
  %v644 = vpow.pop %v643
  %v645 = vadd.f32 %v614, 1.0
  %v646 = vadd.f32 %v616, 1.0
  %v647 = vadd.f32 %v618, 1.0
  %v648 = vadd.f32 %v620, 1.0
  %v649 = vadd.f32 %v622, 1.0
  %v650 = vadd.f32 %v624, 1.0
  %v651 = vadd.f32 %v626, 1.0
  %v652 = vadd.f32 %v628, 1.0
  %v653 = vadd.f32 %v630, 1.0
  %v654 = vadd.f32 %v632, 1.0
  %v655 = vadd.f32 %v634, 1.0
  %v656 = vadd.f32 %v636, 1.0
  %v657 = vadd.f32 %v638, 1.0
  %v658 = vadd.f32 %v640, 1.0
  %v659 = vadd.f32 %v642, 1.0
  %v660 = vadd.f32 %v644, 1.0
  %v661 = vrcp.pop %v645
  %v662 = vmul.f32 1.0, %v661
  %v663 = vrcp.pop %v646
  %v664 = vmul.f32 1.0, %v663
  %v665 = vrcp.pop %v647
  %v666 = vmul.f32 1.0, %v665
  %v667 = vrcp.pop %v648
  %v668 = vmul.f32 1.0, %v667
  %v669 = vrcp.pop %v649
  %v670 = vmul.f32 1.0, %v669
  %v671 = vrcp.pop %v650
  %v672 = vmul.f32 1.0, %v671
  %v673 = vrcp.pop %v651
  %v674 = vmul.f32 1.0, %v673
  %v675 = vrcp.pop %v652
  %v676 = vmul.f32 1.0, %v675
  %v677 = vrcp.pop %v653
  %v678 = vmul.f32 1.0, %v677
  %v679 = vrcp.pop %v654
  %v680 = vmul.f32 1.0, %v679
  %v681 = vrcp.pop %v655
  %v682 = vmul.f32 1.0, %v681
  %v683 = vrcp.pop %v656
  %v684 = vmul.f32 1.0, %v683
  %v685 = vrcp.pop %v657
  %v686 = vmul.f32 1.0, %v685
  %v687 = vrcp.pop %v658
  %v688 = vmul.f32 1.0, %v687
  %v689 = vrcp.pop %v659
  %v690 = vmul.f32 1.0, %v689
  %v691 = vrcp.pop %v660
  %v692 = vmul.f32 1.0, %v691
  %v693 = vtanh.pop %v551
  %v694 = vtanh.pop %v553
  %v695 = vtanh.pop %v557
  %v696 = vtanh.pop %v559
  %v697 = vtanh.pop %v563
  %v698 = vtanh.pop %v565
  %v699 = vtanh.pop %v569
  %v700 = vtanh.pop %v571
  %v701 = vtanh.pop %v575
  %v702 = vtanh.pop %v577
  %v703 = vtanh.pop %v581
  %v704 = vtanh.pop %v583
  %v705 = vtanh.pop %v587
  %v706 = vtanh.pop %v589
  %v707 = vtanh.pop %v593
  %v708 = vtanh.pop %v595
  %v709 = vsub.f32 1.0, %v662
  %v710 = vsub.f32 1.0, %v664
  %v711 = vsub.f32 1.0, %v666
  %v712 = vsub.f32 1.0, %v668
  %v713 = vsub.f32 1.0, %v670
  %v714 = vsub.f32 1.0, %v672
  %v715 = vsub.f32 1.0, %v674
  %v716 = vsub.f32 1.0, %v676
  %v717 = vsub.f32 1.0, %v678
  %v718 = vsub.f32 1.0, %v680
  %v719 = vsub.f32 1.0, %v682
  %v720 = vsub.f32 1.0, %v684
  %v721 = vsub.f32 1.0, %v686
  %v722 = vsub.f32 1.0, %v688
  %v723 = vsub.f32 1.0, %v690
  %v724 = vsub.f32 1.0, %v692
  %v725 = vmul.f32 %v709, %v693
  %v726 = vmul.f32 %v710, %v694
  %v727 = vmul.f32 %v711, %v695
  %v728 = vmul.f32 %v712, %v696
  %v729 = vmul.f32 %v713, %v697
  %v730 = vmul.f32 %v714, %v698
  %v731 = vmul.f32 %v715, %v699
  %v732 = vmul.f32 %v716, %v700
  %v733 = vmul.f32 %v717, %v701
  %v734 = vmul.f32 %v718, %v702
  %v735 = vmul.f32 %v719, %v703
  %v736 = vmul.f32 %v720, %v704
  %v737 = vmul.f32 %v721, %v705
  %v738 = vmul.f32 %v722, %v706
  %v739 = vmul.f32 %v723, %v707
  %v740 = vmul.f32 %v724, %v708
  %v741 = vld [vmem:[%s4] sm:$0xff]
  %v742 = vld [vmem:[%s4 + $0x8] sm:$0xff]
  %v743 = vld [vmem:[%s4 + $0x10] sm:$0xff]
  %v744 = vld [vmem:[%s4 + $0x18] sm:$0xff]
  %v745 = vld [vmem:[%s4 + $0x20] sm:$0xff]
  %v746 = vld [vmem:[%s4 + $0x28] sm:$0xff]
  %v747 = vld [vmem:[%s4 + $0x30] sm:$0xff]
  %v748 = vld [vmem:[%s4 + $0x38] sm:$0xff]
  %v749 = vld [vmem:[%s4 + $0x40] sm:$0xff]
  %v750 = vld [vmem:[%s4 + $0x48] sm:$0xff]
  %v751 = vld [vmem:[%s4 + $0x50] sm:$0xff]
  %v752 = vld [vmem:[%s4 + $0x58] sm:$0xff]
  %v753 = vld [vmem:[%s4 + $0x60] sm:$0xff]
  %v754 = vld [vmem:[%s4 + $0x68] sm:$0xff]
  %v755 = vld [vmem:[%s4 + $0x70] sm:$0xff]
  %v756 = vld [vmem:[%s4 + $0x78] sm:$0xff]
  %v757 = vld [vmem:[%s4 + $0x80] sm:$0xff]
  %v758 = vld [vmem:[%s4 + $0x88] sm:$0xff]
  %v759 = vld [vmem:[%s4 + $0x90] sm:$0xff]
  %v760 = vld [vmem:[%s4 + $0x98] sm:$0xff]
  %v761 = vld [vmem:[%s4 + $0xa0] sm:$0xff]
  %v762 = vld [vmem:[%s4 + $0xa8] sm:$0xff]
  %v763 = vld [vmem:[%s4 + $0xb0] sm:$0xff]
  %v764 = vld [vmem:[%s4 + $0xb8] sm:$0xff]
  %v765 = vld [vmem:[%s4 + $0xc0] sm:$0xff]
  %v766 = vld [vmem:[%s4 + $0xc8] sm:$0xff]
  %v767 = vld [vmem:[%s4 + $0xd0] sm:$0xff]
  %v768 = vld [vmem:[%s4 + $0xd8] sm:$0xff]
  %v769 = vld [vmem:[%s4 + $0xe0] sm:$0xff]
  %v770 = vld [vmem:[%s4 + $0xe8] sm:$0xff]
  %v771 = vld [vmem:[%s4 + $0xf0] sm:$0xff]
  %v772 = vld [vmem:[%s4 + $0xf8] sm:$0xff]
  %773 = vmatprep.subr.mxu0 0.0
  %774 = vmatpush1.msra.mxu0 %v741
  %775 = vmatprep.subr.mxu0 0.0
  %776 = vmatpush1.msra.mxu0 %v742
  %777 = vmatprep.subr.mxu0 0.0
  %778 = vmatpush1.msra.mxu0 %v743
  %779 = vmatprep.subr.mxu0 0.0
  %780 = vmatpush1.msra.mxu0 %v744
  %781 = vmatprep.subr.mxu0 0.0
  %782 = vmatpush1.msra.mxu0 %v745
  %783 = vmatprep.subr.mxu0 0.0
  %784 = vmatpush1.msra.mxu0 %v746
  %785 = vmatprep.subr.mxu0 0.0
  %786 = vmatpush1.msra.mxu0 %v747
  %787 = vmatprep.subr.mxu0 0.0
  %788 = vmatpush1.msra.mxu0 %v748
  %789 = vmatprep.subr.mxu0 0.0
  %790 = vmatpush1.msra.mxu0 %v749
  %791 = vmatprep.subr.mxu0 0.0
  %792 = vmatpush1.msra.mxu0 %v750
  %793 = vmatprep.subr.mxu0 0.0
  %794 = vmatpush1.msra.mxu0 %v751
  %795 = vmatprep.subr.mxu0 0.0
  %796 = vmatpush1.msra.mxu0 %v752
  %797 = vmatprep.subr.mxu0 0.0
  %798 = vmatpush1.msra.mxu0 %v753
  %799 = vmatprep.subr.mxu0 0.0
  %800 = vmatpush1.msra.mxu0 %v754
  %801 = vmatprep.subr.mxu0 0.0
  %802 = vmatpush1.msra.mxu0 %v755
  %803 = vmatprep.subr.mxu0 0.0
  %804 = vmatpush1.msra.mxu0 %v756
  %805 = vmatprep.subr.mxu0 0.0
  %806 = vmatpush1.msra.mxu0 %v757
  %807 = vmatprep.subr.mxu0 0.0
  %808 = vmatpush1.msra.mxu0 %v758
  %809 = vmatprep.subr.mxu0 0.0
  %810 = vmatpush1.msra.mxu0 %v759
  %811 = vmatprep.subr.mxu0 0.0
  %812 = vmatpush1.msra.mxu0 %v760
  %813 = vmatprep.subr.mxu0 0.0
  %814 = vmatpush1.msra.mxu0 %v761
  %815 = vmatprep.subr.mxu0 0.0
  %816 = vmatpush1.msra.mxu0 %v762
  %817 = vmatprep.subr.mxu0 0.0
  %818 = vmatpush1.msra.mxu0 %v763
  %819 = vmatprep.subr.mxu0 0.0
  %820 = vmatpush1.msra.mxu0 %v764
  %821 = vmatprep.subr.mxu0 0.0
  %822 = vmatpush1.msra.mxu0 %v765
  %823 = vmatprep.subr.mxu0 0.0
  %824 = vmatpush1.msra.mxu0 %v766
  %825 = vmatprep.subr.mxu0 0.0
  %826 = vmatpush1.msra.mxu0 %v767
  %827 = vmatprep.subr.mxu0 0.0
  %828 = vmatpush1.msra.mxu0 %v768
  %829 = vmatprep.subr.mxu0 0.0
  %830 = vmatpush1.msra.mxu0 %v769
  %831 = vmatprep.subr.mxu0 0.0
  %832 = vmatpush1.msra.mxu0 %v770
  %833 = vmatprep.subr.mxu0 0.0
  %834 = vmatpush1.msra.mxu0 %v771
  %835 = vmatprep.subr.mxu0 0.0
  %836 = vmatpush1.msra.mxu0 %v772
  %837 = vmatprep.mubr.f32.mxu0 %v726
  %838 = vmatmul.mubr.f32.gmra.mrb[0].mxu0 %v725
  %v839 = vpop.f32.mrb[0].mxu0
  %v840 = vadd.f32 0.0, %v839
  %v841 = vpop.f32.mrb[0].mxu0
  %842 = vmatprep.mubr.f32.mxu0 %v728
  %843 = vmatmul.mubr.f32.gmra.mrb[0].mxu0 %v727
  %v844 = vpop.f32.mrb[0].mxu0
  %v845 = vadd.f32 0.0, %v844
  %v846 = vpop.f32.mrb[0].mxu0
  %847 = vmatprep.mubr.f32.mxu0 %v730
  %848 = vmatmul.mubr.f32.gmra.mrb[0].mxu0 %v729
  %v849 = vpop.f32.mrb[0].mxu0
  %v850 = vadd.f32 0.0, %v849
  %v851 = vpop.f32.mrb[0].mxu0
  %852 = vmatprep.mubr.f32.mxu0 %v732
  %853 = vmatmul.mubr.f32.gmra.mrb[0].mxu0 %v731
  %v854 = vpop.f32.mrb[0].mxu0
  %v855 = vadd.f32 0.0, %v854
  %v856 = vpop.f32.mrb[0].mxu0
  %857 = vmatprep.mubr.f32.mxu0 %v734
  %858 = vmatmul.mubr.f32.gmra.mrb[0].mxu0 %v733
  %v859 = vpop.f32.mrb[0].mxu0
  %v860 = vadd.f32 0.0, %v859
  %v861 = vpop.f32.mrb[0].mxu0
  %862 = vmatprep.mubr.f32.mxu0 %v736
  %863 = vmatmul.mubr.f32.gmra.mrb[0].mxu0 %v735
  %v864 = vpop.f32.mrb[0].mxu0
  %v865 = vadd.f32 0.0, %v864
  %v866 = vpop.f32.mrb[0].mxu0
  %867 = vmatprep.mubr.f32.mxu0 %v738
  %868 = vmatmul.mubr.f32.gmra.mrb[0].mxu0 %v737
  %v869 = vpop.f32.mrb[0].mxu0
  %v870 = vadd.f32 0.0, %v869
  %v871 = vpop.f32.mrb[0].mxu0
  %872 = vmatprep.mubr.f32.mxu0 %v740
  %873 = vmatmul.mubr.f32.gmra.mrb[0].mxu0 %v739
  %v874 = vpop.f32.mrb[0].mxu0
  %v875 = vadd.f32 0.0, %v874
  %v876 = vpop.f32.mrb[0].mxu0
  %877 = vdwg.mxu0
  %v878 = vmax.f32 %v840, 0.0
  %v879 = vmax.f32 %v845, 0.0
  %v880 = vmax.f32 %v850, 0.0
  %v881 = vmax.f32 %v855, 0.0
  %v882 = vmax.f32 %v860, 0.0
  %v883 = vmax.f32 %v865, 0.0
  %v884 = vmax.f32 %v870, 0.0
  %v885 = vmax.f32 %v875, 0.0
  %v886 = vld [vmem:[%s5] sm:$0xff]
  %v887 = vld [vmem:[%s5 + $0x8] sm:$0xff]
  %v888 = vld [vmem:[%s5 + $0x10] sm:$0xff]
  %v889 = vld [vmem:[%s5 + $0x18] sm:$0xff]
  %v890 = vld [vmem:[%s5 + $0x20] sm:$0xff]
  %v891 = vld [vmem:[%s5 + $0x28] sm:$0xff]
  %v892 = vld [vmem:[%s5 + $0x30] sm:$0xff]
  %v893 = vld [vmem:[%s5 + $0x38] sm:$0xff]
  %v894 = vld [vmem:[%s5 + $0x40] sm:$0xff]
  %v895 = vld [vmem:[%s5 + $0x48] sm:$0xff]
  %v896 = vld [vmem:[%s5 + $0x50] sm:$0xff]
  %v897 = vld [vmem:[%s5 + $0x58] sm:$0xff]
  %v898 = vld [vmem:[%s5 + $0x60] sm:$0xff]
  %v899 = vld [vmem:[%s5 + $0x68] sm:$0xff]
  %v900 = vld [vmem:[%s5 + $0x70] sm:$0xff]
  %v901 = vld [vmem:[%s5 + $0x78] sm:$0xff]
  %v902 = vld [vmem:[%s6] sm:$0x1]
  %v904 = vlaneseq
  %v905 = vshrl.u32 %v904, 7
  %v906 = vsub.s32 0, %v905
  %v907 = vrot.slane %v902, %v906
  %909 = vmatprep.subr.mxu0 0.0
  %910 = vmatpush1.msra.mxu0 %v886
  %911 = vmatprep.subr.mxu0 0.0
  %912 = vmatpush1.msra.mxu0 %v887
  %913 = vmatprep.subr.mxu0 0.0
  %914 = vmatpush1.msra.mxu0 %v888
  %915 = vmatprep.subr.mxu0 0.0
  %916 = vmatpush1.msra.mxu0 %v889
  %917 = vmatprep.subr.mxu0 0.0
  %918 = vmatpush1.msra.mxu0 %v890
  %919 = vmatprep.subr.mxu0 0.0
  %920 = vmatpush1.msra.mxu0 %v891
  %921 = vmatprep.subr.mxu0 0.0
  %922 = vmatpush1.msra.mxu0 %v892
  %923 = vmatprep.subr.mxu0 0.0
  %924 = vmatpush1.msra.mxu0 %v893
  %925 = vmatprep.subr.mxu0 0.0
  %926 = vmatpush1.msra.mxu0 %v894
  %927 = vmatprep.subr.mxu0 0.0
  %928 = vmatpush1.msra.mxu0 %v895
  %929 = vmatprep.subr.mxu0 0.0
  %930 = vmatpush1.msra.mxu0 %v896
  %931 = vmatprep.subr.mxu0 0.0
  %932 = vmatpush1.msra.mxu0 %v897
  %933 = vmatprep.subr.mxu0 0.0
  %934 = vmatpush1.msra.mxu0 %v898
  %935 = vmatprep.subr.mxu0 0.0
  %936 = vmatpush1.msra.mxu0 %v899
  %937 = vmatprep.subr.mxu0 0.0
  %938 = vmatpush1.msra.mxu0 %v900
  %939 = vmatprep.subr.mxu0 0.0
  %940 = vmatpush1.msra.mxu0 %v901
  %941 = vmatprep.subr.mxu0 0.0
  %942 = vmatpush1.msra.mxu0 0.0
  %943 = vmatprep.subr.mxu0 0.0
  %944 = vmatpush1.msra.mxu0 0.0
  %945 = vmatprep.subr.mxu0 0.0
  %946 = vmatpush1.msra.mxu0 0.0
  %947 = vmatprep.subr.mxu0 0.0
  %948 = vmatpush1.msra.mxu0 0.0
  %949 = vmatprep.subr.mxu0 0.0
  %950 = vmatpush1.msra.mxu0 0.0
  %951 = vmatprep.subr.mxu0 0.0
  %952 = vmatpush1.msra.mxu0 0.0
  %953 = vmatprep.subr.mxu0 0.0
  %954 = vmatpush1.msra.mxu0 0.0
  %955 = vmatprep.subr.mxu0 0.0
  %956 = vmatpush1.msra.mxu0 0.0
  %957 = vmatprep.subr.mxu0 0.0
  %958 = vmatpush1.msra.mxu0 0.0
  %959 = vmatprep.subr.mxu0 0.0
  %960 = vmatpush1.msra.mxu0 0.0
  %961 = vmatprep.subr.mxu0 0.0
  %962 = vmatpush1.msra.mxu0 0.0
  %963 = vmatprep.subr.mxu0 0.0
  %964 = vmatpush1.msra.mxu0 0.0
  %965 = vmatprep.subr.mxu0 0.0
  %966 = vmatpush1.msra.mxu0 0.0
  %967 = vmatprep.subr.mxu0 0.0
  %968 = vmatpush1.msra.mxu0 0.0
  %969 = vmatprep.subr.mxu0 0.0
  %970 = vmatpush1.msra.mxu0 0.0
  %971 = vmatprep.subr.mxu0 0.0
  %972 = vmatpush1.msra.mxu0 0.0
  %973 = vmatprep.mubr.f32.mxu0 0.0
  %974 = vmatmul.mubr.f32.gmra.mrb[0].mxu0 %v878
  %v975 = vpop.f32.mrb[0].mxu0
  %v976 = vadd.f32 %v907, %v975
  %v977 = vpop.f32.mrb[0].mxu0
  %978 = vmatprep.mubr.f32.mxu0 0.0
  %979 = vmatmul.mubr.f32.gmra.mrb[0].mxu0 %v879
  %v980 = vpop.f32.mrb[0].mxu0
  %v981 = vadd.f32 %v907, %v980
  %v982 = vpop.f32.mrb[0].mxu0
  %983 = vmatprep.mubr.f32.mxu0 0.0
  %984 = vmatmul.mubr.f32.gmra.mrb[0].mxu0 %v880
  %v985 = vpop.f32.mrb[0].mxu0
  %v986 = vadd.f32 %v907, %v985
  %v987 = vpop.f32.mrb[0].mxu0
  %988 = vmatprep.mubr.f32.mxu0 0.0
  %989 = vmatmul.mubr.f32.gmra.mrb[0].mxu0 %v881
  %v990 = vpop.f32.mrb[0].mxu0
  %v991 = vadd.f32 %v907, %v990
  %v992 = vpop.f32.mrb[0].mxu0
  %993 = vmatprep.mubr.f32.mxu0 0.0
  %994 = vmatmul.mubr.f32.gmra.mrb[0].mxu0 %v882
  %v995 = vpop.f32.mrb[0].mxu0
  %v996 = vadd.f32 %v907, %v995
  %v997 = vpop.f32.mrb[0].mxu0
  %998 = vmatprep.mubr.f32.mxu0 0.0
  %999 = vmatmul.mubr.f32.gmra.mrb[0].mxu0 %v883
  %v1000 = vpop.f32.mrb[0].mxu0
  %v1001 = vadd.f32 %v907, %v1000
  %v1002 = vpop.f32.mrb[0].mxu0
  %1003 = vmatprep.mubr.f32.mxu0 0.0
  %1004 = vmatmul.mubr.f32.gmra.mrb[0].mxu0 %v884
  %v1005 = vpop.f32.mrb[0].mxu0
  %v1006 = vadd.f32 %v907, %v1005
  %v1007 = vpop.f32.mrb[0].mxu0
  %1008 = vmatprep.mubr.f32.mxu0 0.0
  %1009 = vmatmul.mubr.f32.gmra.mrb[0].mxu0 %v885
  %v1010 = vpop.f32.mrb[0].mxu0
  %v1011 = vadd.f32 %v907, %v1010
  %v1012 = vpop.f32.mrb[0].mxu0
  %1013 = vdwg.mxu0
  %1014 = vst [vmem:[%s7] sm:$0xff] %v976
  %1015 = vst [vmem:[%s7 + $0x8] sm:$0xff] %v981
  %1016 = vst [vmem:[%s7 + $0x10] sm:$0xff] %v986
  %1017 = vst [vmem:[%s7 + $0x18] sm:$0xff] %v991
  %1018 = vst [vmem:[%s7 + $0x20] sm:$0xff] %v996
  %1019 = vst [vmem:[%s7 + $0x28] sm:$0xff] %v1001
  %1020 = vst [vmem:[%s7 + $0x30] sm:$0xff] %v1006
  %1021 = vst [vmem:[%s7 + $0x38] sm:$0xff] %v1011
  // Predicated region
  $region30: #{a3tgcn_temporal.1} parent=0 // pred_check
    _
  $region31: #{a3tgcn_temporal.1} parent=0 // pred_check_branch
    %1023 = sbr.rel (0) target = $region33
  $region32: #{a3tgcn_temporal.1} parent=0 // pred_region
    _
  $region33: #{a3tgcn_temporal.1} parent=0 // pred_fallthru
    _
  // Predicated region
  $region34: #{a3tgcn_temporal.1} parent=0 // pred_check
    _
  $region35: #{a3tgcn_temporal.1} parent=0 // pred_check_branch
    %1025 = sbr.rel (0) target = $region37
  $region36: #{a3tgcn_temporal.1} parent=0 // pred_region
    _
  $region37: #{a3tgcn_temporal.1} parent=0 // pred_fallthru
    _

</llo_original>
